<compile_context>
chip_gen: v7x
topology: tpu7x:2x2x1
jax: 0.10.0
libtpu: 0.0.40
codegen_flags: <defaults>
</compile_context>

<pallas_src>
from functools import partial

import jax
import jax.numpy as jnp
from jax import lax
from jax.experimental import pallas as pl
from jax.experimental.pallas import tpu as pltpu


def _round_up(x, m):
    return (x + m - 1) // m * m


# ---------------------------------------------------------------------------
# Kernel 1: fused per-head Q/K/V projection.
# grid = (batch, seq tiles).  Each x tile is projected once; the flash kernel
# below re-reads the projected tiles instead of recomputing them per q tile.
# ---------------------------------------------------------------------------
def _qkv_proj_kernel(x_ref, wq_ref, wk_ref, wv_ref, q_ref, k_ref, v_ref, *,
                     num_heads):
    x = x_ref[0]                                          # (t, E_pad)
    for h in range(num_heads):                            # static unroll
        q_ref[0, h] = jnp.dot(
            x, wq_ref[h], preferred_element_type=jnp.float32).astype(q_ref.dtype)
        k_ref[0, h] = jnp.dot(
            x, wk_ref[h], preferred_element_type=jnp.float32).astype(k_ref.dtype)
        v_ref[0, h] = jnp.dot(
            x, wv_ref[h], preferred_element_type=jnp.float32).astype(v_ref.dtype)


# ---------------------------------------------------------------------------
# Kernel 2: flash attention + fc_out projection + bias + round(decimals=4).
# grid = (batch, q tiles, kv tiles); kv is the innermost "arbitrary" reduction
# axis, online-softmax state lives in VMEM scratch.
# ---------------------------------------------------------------------------
def _flash_attn_kernel(q_ref, k_ref, v_ref, wo_ref, bo_ref, o_ref,
                       m_sc, l_sc, acc_sc, *,
                       num_heads, seq_len, kv_tile, need_mask):
    ki = pl.program_id(2)
    nk = pl.num_programs(2)

    @pl.when(ki == 0)
    def _init():
        m_sc[...] = jnp.full_like(m_sc, -jnp.inf)
        l_sc[...] = jnp.zeros_like(l_sc)
        # acc must stay zero-initialized: at ki==0 alpha==0 and 0*0 is relied on.
        acc_sc[...] = jnp.zeros_like(acc_sc)

    if need_mask:
        # Additive mask, computed ONCE per kv step (hoisted out of the head
        # loop).  Safe because every kv tile holds >=1 valid position
        # (S_pad - S < kv_tile by construction).
        kv_pos = ki * kv_tile + lax.broadcasted_iota(jnp.int32, (1, kv_tile), 1)
        mask_add = jnp.where(kv_pos < seq_len, 0.0, -1e30)       # (1, tk) f32

    for h in range(num_heads):                                    # static unroll
        qh = q_ref[0, h]                                          # (tq, hd)
        kh = k_ref[0, h]                                          # (tk, hd)
        vh = v_ref[0, h]                                          # (tk, hd)

        # q @ k^T without materializing a transpose (contract the head dims).
        s = lax.dot_general(qh, kh, (((1,), (1,)), ((), ())),
                            preferred_element_type=jnp.float32)   # (tq, tk)
        if need_mask:
            s = s + mask_add

        m_prev = m_sc[h]                                          # (tq, 1)
        m_new = jnp.maximum(m_prev, jnp.max(s, axis=-1, keepdims=True))
        alpha = jnp.exp(m_prev - m_new)
        p = jnp.exp(s - m_new)                                    # (tq, tk)
        l_sc[h] = alpha * l_sc[h] + jnp.sum(p, axis=-1, keepdims=True)
        # Head-leading layout => whole-slab, tile-aligned accumulator update.
        acc_sc[h] = alpha * acc_sc[h] + jnp.dot(
            p.astype(vh.dtype), vh, preferred_element_type=jnp.float32)
        m_sc[h] = m_new

    @pl.when(ki == nk - 1)
    def _finalize():
        tq = acc_sc.shape[1]
        a_pad = wo_ref.shape[-1]
        # fc_out projection kept in f32 for the round(decimals=4) epilogue.
        y = jnp.zeros((tq, a_pad), jnp.float32)
        for h in range(num_heads):
            inv = pl.reciprocal(l_sc[h], approx=True)             # EUP slot
            inv = inv * (2.0 - l_sc[h] * inv)                     # 1 NR step -> f32 accuracy
            y = y + jnp.dot(acc_sc[h] * inv, wo_ref[h],
                            preferred_element_type=jnp.float32)
        y = y + bo_ref[...]
        o_ref[0] = jnp.round(y, decimals=4).astype(o_ref.dtype)


def multi_headed_self_attention(x, wq, wk, wv, wo, bo, *, q_tile=256,
                                compute_dtype=jnp.bfloat16):
    """x: (B, S, E); wq/wk/wv: (H, head_dim, E) in nn.Linear (out, in) layout;
    wo: (A, A); bo: (A,).  Returns (B, S, A) float32.

    compute_dtype=bf16 gives ~2-4x MXU throughput on v6e/v7x and halves
    Q/K/V/weight DMA; pass jnp.float32 for exact parity with the f32 torch
    math.  On v6e, q_tile can be raised to 512 (128 MiB VMEM); keep 256 on
    v5e/v7x.
    """
    B, S, E = x.shape
    H, head_dim, _ = wq.shape
    A = wo.shape[0]

    LANE, SUB = 128, 8
    E_pad = _round_up(E, LANE)
    A_pad = _round_up(A, LANE)
    # head_dim is NOT padded to 128 lanes; the head-leading (H, t, hd) layout
    # keeps per-head slices tile-aligned without zero-multiply padding.
    hd_pad = _round_up(head_dim, SUB)

    # One tile size shared by the query and kv axes of the sequence.
    t = min(q_tile, _round_up(S, SUB))
    S_pad = _round_up(S, t)
    n_tiles = S_pad // t

    f32 = jnp.float32

    # ---- host-side (one-time, vectorized) weight packing -------------------
    scale = 1.0 / jnp.sqrt(jnp.asarray(head_dim, f32))

    def pack_proj(w, scl):
        # (H, head_dim, E) -> transpose -> pad -> (H, E_pad, hd_pad)
        w_t = jnp.transpose(w.astype(f32), (0, 2, 1)) * scl
        return jnp.pad(w_t, ((0, 0), (0, E_pad - E),
                             (0, hd_pad - head_dim))).astype(compute_dtype)

    wq_p = pack_proj(wq, scale)        # softmax scale folded into the Q weights
    wk_p = pack_proj(wk, 1.0)
    wv_p = pack_proj(wv, 1.0)

    # fc_out: pre-transposed, split per head -> (H, hd_pad, A_pad), kept f32.
    wo_p = jnp.pad(wo.T.astype(f32).reshape(H, head_dim, A),
                   ((0, 0), (0, hd_pad - head_dim), (0, A_pad - A)))
    bo_p = jnp.pad(bo.astype(f32), (0, A_pad - A)).reshape(1, A_pad)

    # Zero-padded, lane-dense input.
    x_p = jnp.pad(x.astype(f32), ((0, 0), (0, S_pad - S),
                                  (0, E_pad - E))).astype(compute_dtype)

    # ---- pass 1: Q/K/V projection (once per sequence tile) -----------------
    qkv_shape = jax.ShapeDtypeStruct((B, H, S_pad, hd_pad), compute_dtype)
    w_spec = pl.BlockSpec((H, E_pad, hd_pad), lambda b, si: (0, 0, 0))
    qkv_spec = pl.BlockSpec((1, H, t, hd_pad), lambda b, si: (b, 0, si, 0))
    q, k, v = pl.pallas_call(
        partial(_qkv_proj_kernel, num_heads=H),
        out_shape=(qkv_shape, qkv_shape, qkv_shape),
        grid=(B, n_tiles),
        in_specs=[
            pl.BlockSpec((1, t, E_pad), lambda b, si: (b, si, 0)),
            w_spec, w_spec, w_spec,
        ],
        out_specs=(qkv_spec, qkv_spec, qkv_spec),
        compiler_params=pltpu.CompilerParams(
            dimension_semantics=("parallel", "parallel")),
    )(x_p, wq_p, wk_p, wv_p)

    # ---- pass 2: flash attention + output projection ------------------------
    isz = lambda dt: jnp.dtype(dt).itemsize
    vmem_need = (
        2 * 3 * H * t * hd_pad * isz(compute_dtype)    # q/k/v blocks (double-buffered)
        + 2 * H * hd_pad * A_pad * isz(f32)            # wo blocks
        + 2 * A_pad * isz(f32)                         # bias blocks
        + 2 * t * A_pad * isz(f32)                     # output blocks
        + H * t * (2 + hd_pad) * isz(f32))             # scratch accumulators
    vmem_limit = int(min(max(4 * vmem_need, 32 * 2**20), 64 * 2**20))

    flash = partial(_flash_attn_kernel, num_heads=H, seq_len=S, kv_tile=t,
                    need_mask=(S_pad != S))
    out_p = pl.pallas_call(
        flash,
        out_shape=jax.ShapeDtypeStruct((B, S_pad, A_pad), f32),
        grid=(B, n_tiles, n_tiles),
        in_specs=[
            pl.BlockSpec((1, H, t, hd_pad), lambda b, qi, ki: (b, 0, qi, 0)),  # Q
            pl.BlockSpec((1, H, t, hd_pad), lambda b, qi, ki: (b, 0, ki, 0)),  # K
            pl.BlockSpec((1, H, t, hd_pad), lambda b, qi, ki: (b, 0, ki, 0)),  # V
            pl.BlockSpec((H, hd_pad, A_pad), lambda b, qi, ki: (0, 0, 0)),     # Wo^T
            pl.BlockSpec((1, A_pad), lambda b, qi, ki: (0, 0)),                # bias
        ],
        out_specs=pl.BlockSpec((1, t, A_pad), lambda b, qi, ki: (b, qi, 0)),
        scratch_shapes=[
            pltpu.VMEM((H, t, 1), f32),        # running max per head
            pltpu.VMEM((H, t, 1), f32),        # running softmax denom per head
            pltpu.VMEM((H, t, hd_pad), f32),   # output accumulator
        ],
        compiler_params=pltpu.CompilerParams(
            dimension_semantics=("parallel", "parallel", "arbitrary"),
            vmem_limit_bytes=vmem_limit),
    )(q, k, v, wo_p, bo_p)

    return out_p[:, :S, :A]


if __name__ == "__main__":
    # Module hyper-params from the reference script.
    embedding_dim = 2
    attention_dim = 3
    num_heads = 1
    head_dim = attention_dim // num_heads

    # Input from the reference script: (batch=2, context=2, embedding_dim=2).
    x = jnp.array(
        [[[-1.4381, 0.1232], [-0.1080, 0.3458]],
         [[ 0.1929, -0.8567], [-0.1160, 1.2547]]], dtype=jnp.float32)

    # Deterministic synthetic parameter init (same shapes as the nn.Module).
    # TODO(synk): exact torch.manual_seed(0) nn.Linear values are not
    # reproducible without torch; jax.random with matching uniform bounds.
    key = jax.random.PRNGKey(0)
    kq, kk, kv_, kw, kb = jax.random.split(key, 5)
    bound_proj = 1.0 / jnp.sqrt(jnp.float32(embedding_dim))
    wq = jax.random.uniform(kq, (num_heads, head_dim, embedding_dim),
                            jnp.float32, -bound_proj, bound_proj)
    wk = jax.random.uniform(kk, (num_heads, head_dim, embedding_dim),
                            jnp.float32, -bound_proj, bound_proj)
    wv = jax.random.uniform(kv_, (num_heads, head_dim, embedding_dim),
                            jnp.float32, -bound_proj, bound_proj)
    bound_out = 1.0 / jnp.sqrt(jnp.float32(attention_dim))
    wo = jax.random.uniform(kw, (attention_dim, attention_dim),
                            jnp.float32, -bound_out, bound_out)
    bo = jax.random.uniform(kb, (attention_dim,),
                            jnp.float32, -bound_out, bound_out)

    # Pure-JAX f32 reference of the same math.
    def ref(x, wq, wk, wv, wo, bo):
        outs = []
        for h in range(num_heads):
            q = x @ wq[h].T
            k = x @ wk[h].T
            v = x @ wv[h].T
            s = jnp.einsum("bqd,bkd->bqk", q, k) / jnp.sqrt(jnp.float32(head_dim))
            a = jax.nn.softmax(s, axis=-1)
            outs.append(jnp.einsum("bqk,bkd->bqd", a, v))
        cat = jnp.concatenate(outs, axis=-1)
        return jnp.round(cat @ wo.T + bo, decimals=4)

    expected = ref(x, wq, wk, wv, wo, bo)

    # Default (performance) path: bf16 operands, f32 accumulation.
    out_bf16 = multi_headed_self_attention(x, wq, wk, wv, wo, bo)
    jax.block_until_ready(out_bf16)
    assert out_bf16.shape == (2, 2, attention_dim)
    assert jnp.allclose(out_bf16, expected, atol=5e-2), (out_bf16, expected)

    # f32 compute path: exact parity with the f32 reference (round-to-4dp).
    out_f32 = multi_headed_self_attention(x, wq, wk, wv, wo, bo,
                                          compute_dtype=jnp.float32)
    jax.block_until_ready(out_f32)
    assert jnp.allclose(out_f32, expected, atol=2e-4), (out_f32, expected)

    print("KERNEL_OK")
</pallas_src>

<mosaic_0001>
module attributes {stable_mosaic.version = 11 : i64} {
  func.func @_qkv_proj_kernel(%arg0: i32, %arg1: i32, %arg2: memref<1x8x128xbf16, #tpu.memory_space<vmem>>, %arg3: memref<1x128x8xbf16, #tpu.memory_space<vmem>>, %arg4: memref<1x128x8xbf16, #tpu.memory_space<vmem>>, %arg5: memref<1x128x8xbf16, #tpu.memory_space<vmem>>, %arg6: memref<1x1x8x8xbf16, #tpu.memory_space<vmem>>, %arg7: memref<1x1x8x8xbf16, #tpu.memory_space<vmem>>, %arg8: memref<1x1x8x8xbf16, #tpu.memory_space<vmem>>) attributes {dimension_semantics = [#tpu.dimension_semantics<parallel>, #tpu.dimension_semantics<parallel>], iteration_bounds = array<i64: 2, 1>, scalar_prefetch = 0 : i64, scratch_operands = 0 : i64, tpu.core_type = #tpu.core_type<tc>, window_params = [{transform_indices = @transform_0, window_bounds = array<i64: 1, 8, 128>}, {pipeline_mode = #tpu.pipeline_mode<synchronous>, transform_indices = @transform_1, window_bounds = array<i64: 1, 128, 8>}, {pipeline_mode = #tpu.pipeline_mode<synchronous>, transform_indices = @transform_2, window_bounds = array<i64: 1, 128, 8>}, {pipeline_mode = #tpu.pipeline_mode<synchronous>, transform_indices = @transform_3, window_bounds = array<i64: 1, 128, 8>}, {transform_indices = @transform_4, window_bounds = array<i64: 1, 1, 8, 8>}, {transform_indices = @transform_5, window_bounds = array<i64: 1, 1, 8, 8>}, {transform_indices = @transform_6, window_bounds = array<i64: 1, 1, 8, 8>}]} {
    %c0 = arith.constant 0 : index
    %c0_0 = arith.constant 0 : index
    %c0_1 = arith.constant 0 : index
    %0 = vector.load %arg2[%c0, %c0_0, %c0_1] : memref<1x8x128xbf16, #tpu.memory_space<vmem>>, vector<1x8x128xbf16>
    %1 = vector.shape_cast %0 : vector<1x8x128xbf16> to vector<8x128xbf16>
    %c0_2 = arith.constant 0 : index
    %c0_3 = arith.constant 0 : index
    %c0_4 = arith.constant 0 : index
    %2 = vector.load %arg3[%c0_2, %c0_3, %c0_4] : memref<1x128x8xbf16, #tpu.memory_space<vmem>>, vector<1x128x8xbf16>
    %3 = vector.shape_cast %2 : vector<1x128x8xbf16> to vector<128x8xbf16>
    %cst = arith.constant dense<0.000000e+00> : vector<8x8xf32>
    %4 = tpu.matmul %1, %3, %cst {dimension_numbers = #tpu.dot_dimension_numbers<[1], [0], [0], [1], [0, 0, 1, 1], [], []>} : vector<8x128xbf16>, vector<128x8xbf16>, vector<8x8xf32> -> vector<8x8xf32>
    %5 = arith.truncf %4 : vector<8x8xf32> to vector<8x8xbf16>
    %c0_5 = arith.constant 0 : index
    %c0_6 = arith.constant 0 : index
    %c0_7 = arith.constant 0 : index
    %c0_8 = arith.constant 0 : index
    %6 = vector.load %arg6[%c0_5, %c0_6, %c0_7, %c0_8] : memref<1x1x8x8xbf16, #tpu.memory_space<vmem>>, vector<1x1x8x8xbf16>
    %7 = vector.shape_cast %6 : vector<1x1x8x8xbf16> to vector<8x8xbf16>
    %8 = vector.shape_cast %5 : vector<8x8xbf16> to vector<1x1x8x8xbf16>
    tpu.vector_store %arg6[%c0_5, %c0_6, %c0_7, %c0_8], %8 {strides = array<i32>} : memref<1x1x8x8xbf16, #tpu.memory_space<vmem>>, vector<1x1x8x8xbf16>,
    %c0_9 = arith.constant 0 : index
    %c0_10 = arith.constant 0 : index
    %c0_11 = arith.constant 0 : index
    %9 = vector.load %arg4[%c0_9, %c0_10, %c0_11] : memref<1x128x8xbf16, #tpu.memory_space<vmem>>, vector<1x128x8xbf16>
    %10 = vector.shape_cast %9 : vector<1x128x8xbf16> to vector<128x8xbf16>
    %cst_12 = arith.constant dense<0.000000e+00> : vector<8x8xf32>
    %11 = tpu.matmul %1, %10, %cst_12 {dimension_numbers = #tpu.dot_dimension_numbers<[1], [0], [0], [1], [0, 0, 1, 1], [], []>} : vector<8x128xbf16>, vector<128x8xbf16>, vector<8x8xf32> -> vector<8x8xf32>
    %12 = arith.truncf %11 : vector<8x8xf32> to vector<8x8xbf16>
    %c0_13 = arith.constant 0 : index
    %c0_14 = arith.constant 0 : index
    %c0_15 = arith.constant 0 : index
    %c0_16 = arith.constant 0 : index
    %13 = vector.load %arg7[%c0_13, %c0_14, %c0_15, %c0_16] : memref<1x1x8x8xbf16, #tpu.memory_space<vmem>>, vector<1x1x8x8xbf16>
    %14 = vector.shape_cast %13 : vector<1x1x8x8xbf16> to vector<8x8xbf16>
    %15 = vector.shape_cast %12 : vector<8x8xbf16> to vector<1x1x8x8xbf16>
    tpu.vector_store %arg7[%c0_13, %c0_14, %c0_15, %c0_16], %15 {strides = array<i32>} : memref<1x1x8x8xbf16, #tpu.memory_space<vmem>>, vector<1x1x8x8xbf16>,
    %c0_17 = arith.constant 0 : index
    %c0_18 = arith.constant 0 : index
    %c0_19 = arith.constant 0 : index
    %16 = vector.load %arg5[%c0_17, %c0_18, %c0_19] : memref<1x128x8xbf16, #tpu.memory_space<vmem>>, vector<1x128x8xbf16>
    %17 = vector.shape_cast %16 : vector<1x128x8xbf16> to vector<128x8xbf16>
    %cst_20 = arith.constant dense<0.000000e+00> : vector<8x8xf32>
    %18 = tpu.matmul %1, %17, %cst_20 {dimension_numbers = #tpu.dot_dimension_numbers<[1], [0], [0], [1], [0, 0, 1, 1], [], []>} : vector<8x128xbf16>, vector<128x8xbf16>, vector<8x8xf32> -> vector<8x8xf32>
    %19 = arith.truncf %18 : vector<8x8xf32> to vector<8x8xbf16>
    %c0_21 = arith.constant 0 : index
    %c0_22 = arith.constant 0 : index
    %c0_23 = arith.constant 0 : index
    %c0_24 = arith.constant 0 : index
    %20 = vector.load %arg8[%c0_21, %c0_22, %c0_23, %c0_24] : memref<1x1x8x8xbf16, #tpu.memory_space<vmem>>, vector<1x1x8x8xbf16>
    %21 = vector.shape_cast %20 : vector<1x1x8x8xbf16> to vector<8x8xbf16>
    %22 = vector.shape_cast %19 : vector<8x8xbf16> to vector<1x1x8x8xbf16>
    tpu.vector_store %arg8[%c0_21, %c0_22, %c0_23, %c0_24], %22 {strides = array<i32>} : memref<1x1x8x8xbf16, #tpu.memory_space<vmem>>, vector<1x1x8x8xbf16>,
    return
  }
  func.func @transform_0(%arg0: i32, %arg1: i32) -> (i32, i32, i32) {
    %c0_i32 = arith.constant 0 : i32
    %c0_i32_0 = arith.constant 0 : i32
    return %arg0, %arg1, %c0_i32 : i32, i32, i32
  }
  func.func @transform_1(%arg0: i32, %arg1: i32) -> (i32, i32, i32) {
    %c0_i32 = arith.constant 0 : i32
    %c0_i32_0 = arith.constant 0 : i32
    %c0_i32_1 = arith.constant 0 : i32
    %c0_i32_2 = arith.constant 0 : i32
    return %c0_i32, %c0_i32_0, %c0_i32_1 : i32, i32, i32
  }
  func.func @transform_2(%arg0: i32, %arg1: i32) -> (i32, i32, i32) {
    %c0_i32 = arith.constant 0 : i32
    %c0_i32_0 = arith.constant 0 : i32
    %c0_i32_1 = arith.constant 0 : i32
    %c0_i32_2 = arith.constant 0 : i32
    return %c0_i32, %c0_i32_0, %c0_i32_1 : i32, i32, i32
  }
  func.func @transform_3(%arg0: i32, %arg1: i32) -> (i32, i32, i32) {
    %c0_i32 = arith.constant 0 : i32
    %c0_i32_0 = arith.constant 0 : i32
    %c0_i32_1 = arith.constant 0 : i32
    %c0_i32_2 = arith.constant 0 : i32
    return %c0_i32, %c0_i32_0, %c0_i32_1 : i32, i32, i32
  }
  func.func @transform_4(%arg0: i32, %arg1: i32) -> (i32, i32, i32, i32) {
    %c0_i32 = arith.constant 0 : i32
    %c0_i32_0 = arith.constant 0 : i32
    %c0_i32_1 = arith.constant 0 : i32
    return %arg0, %c0_i32, %arg1, %c0_i32_0 : i32, i32, i32, i32
  }
  func.func @transform_5(%arg0: i32, %arg1: i32) -> (i32, i32, i32, i32) {
    %c0_i32 = arith.constant 0 : i32
    %c0_i32_0 = arith.constant 0 : i32
    %c0_i32_1 = arith.constant 0 : i32
    return %arg0, %c0_i32, %arg1, %c0_i32_0 : i32, i32, i32, i32
  }
  func.func @transform_6(%arg0: i32, %arg1: i32) -> (i32, i32, i32, i32) {
    %c0_i32 = arith.constant 0 : i32
    %c0_i32_0 = arith.constant 0 : i32
    %c0_i32_1 = arith.constant 0 : i32
    return %arg0, %c0_i32, %arg1, %c0_i32_0 : i32, i32, i32, i32
  }
}

</mosaic_0001>

<llo_original>
// kernel: tpu_custom_call.1
$region0: #{tpu_custom_call.1}
  #allocation0 [shape = 'u32[]', space=smem, size = 0x4, offset = 0x4, fixed_abs, tag = 'smem constant byte address 0x4 - core index']
  #allocation1 [shape = 'u32[144,128]{1,0:T(1,128)}', space=vmem, size = 0x12000, scoped, tag = 'internal scratch']
  %s0 = inlined_call_operand.vmem [shape: bf16[2,8,128], index: 0, kind: input, shape index: {}]
  %s1 = inlined_call_operand.vmem [shape: bf16[1,128,8], index: 1, kind: input, shape index: {}]
  %s2 = inlined_call_operand.vmem [shape: bf16[1,128,8], index: 2, kind: input, shape index: {}]
  %s3 = inlined_call_operand.vmem [shape: bf16[1,128,8], index: 3, kind: input, shape index: {}]
  %s4 = inlined_call_operand.hbm [shape: bf16[2,1,8,8], index: 4, kind: output, shape index: {0}]
  %s5 = inlined_call_operand.hbm [shape: bf16[2,1,8,8], index: 5, kind: output, shape index: {1}]
  %s6 = inlined_call_operand.hbm [shape: bf16[2,1,8,8], index: 6, kind: output, shape index: {2}]
  %7 = xla_tuple %s4, %s5, %s6
  %s8 = sld [smem:[#allocation0]]
  $region65: #{tpu_custom_call.1} parent=0
    _
  %s10 = ssub.s32 1, %s8
  %s11 = scalar_select 0, %s10, %s8
  $region1: #{tpu_custom_call.1} parent=0
    #allocation2 [shape = 'u8[4096]{0}', space=vmem, size = 0x1000, scoped, tag = 'output window, operand 0']
    #allocation3 [shape = 's32[2]{0}', space=sflag, size = 0x8, scoped, tag = 'scoped memory for tpu_custom_call.1']
    #allocation4 [shape = 'u8[4096]{0}', space=vmem, size = 0x1000, scoped, tag = 'output window, operand 1']
    #allocation5 [shape = 's32[2]{0}', space=sflag, size = 0x8, scoped, tag = 'scoped memory for tpu_custom_call.1']
    #allocation6 [shape = 'u8[4096]{0}', space=vmem, size = 0x1000, scoped, tag = 'output window, operand 2']
    %12 = vsyncpa [#allocation3], 0
    %s13 = scalar_lea.sflag [#allocation3], 1
    %14 = vsyncpa %s13, 0
    %15 = vsyncpa [#allocation5], 0
    %s16 = scalar_lea.sflag [#allocation5], 1
    %17 = vsyncpa %s16, 0
    loop: start=0, step=1, limit=4
    $region2: #{tpu_custom_call.1} parent=1 // loop_pre_header
      _
    $region3: #{tpu_custom_call.1} parent=1 // loop_header
      %s19 = sphi 0, %s23
      %p20 = scmp.ge.s32.totalorder %s19, 4
      %s26 = sphi 0, %s38
      %s27 = sphi 0, %s34
      %s28 = sphi 0, %s26
      %s29 = sphi 0, %s27
      %s30 = sphi 0, %s28
      %s31 = sphi 0, %s29
      %s43 = sphi 0, %s45
      %s46 = sphi 0, %s43
      %s47 = sphi 0, %s46
      %s63 = sphi 0, %s47
      %s67 = sphi 0, %s67
      %s69 = sphi 0, %s67
      %s70 = sphi 0, %s69
      %s84 = sphi 0, %s70
      %s88 = sphi 0, %s88
      %s90 = sphi 0, %s88
      %s91 = sphi 0, %s90
      %s105 = sphi 0, %s91
      %s109 = sphi 0, %s109
      %s111 = sphi 0, %s109
      %s112 = sphi 0, %s111
      %s126 = sphi 0, %s112
      %s134 = sphi 0, %s136
      %s137 = sphi 0, %s134
      %s138 = sphi 0, %s137
      %s154 = sphi 0, %s138
      %s162 = sphi 0, %s164
      %s165 = sphi 0, %s162
      %s166 = sphi 0, %s165
      %s182 = sphi 0, %s166
      %s190 = sphi 0, %s192
      %s193 = sphi 0, %s190
      %s194 = sphi 0, %s193
      %s210 = sphi 0, %s194
    $region4: #{tpu_custom_call.1} parent=1 // loop_header_branch
      %22 = sbr.rel (%p20) target = $region8
    $region5: #{tpu_custom_call.1} parent=1 // loop_body
      %s24 = ssub.s32 %s19, 1
      %s25 = ssub.s32 %s19, 2
      %s32 = sadd.s32 1, %s27
      %p33 = scmp.ge.s32.totalorder %s32, 1
      %s34 = scalar_select %p33, 0, %s32
      %s35 = sadd.s32 1, %s26
      %s36 = scalar_select %p33, %s35, %s26
      %p37 = scmp.ge.s32.totalorder %s36, 2
      %s38 = scalar_select %p37, 0, %s36
      %s39 = ssub.s32 %s26, %s38
      %s40 = ssub.s32 %s27, %s34
      %s41 = sor.u32 %s39, %s40
      %p42 = scmp.eq.s32.totalorder %s41, 0
      %s44 = sadd.s32 %s43, 1
      %s45 = scalar_select %p42, %s43, %s44
      %p48 = pneg %p42
      %p49 = scmp.eq.s32.totalorder %s19, 1
      %p50 = por %p48, %p49
      %p51 = scmp.ne.s32.totalorder %s43, %s46
      %p52 = scmp.eq.s32.totalorder %s19, 0
      %p53 = por %p51, %p52
      %p54 = scmp.ne.s32.totalorder %s43, %s46
      %p55 = scmp.eq.s32.totalorder %s24, 1
      %p56 = por %p54, %p55
      %p57 = scmp.ne.s32.totalorder %s46, %s47
      %p58 = scmp.eq.s32.totalorder %s24, 0
      %p59 = por %p57, %p58
      %p60 = scmp.ne.s32.totalorder %s46, %s47
      %p61 = scmp.eq.s32.totalorder %s25, 1
      %p62 = por %p60, %p61
      %p64 = scmp.ne.s32.totalorder %s47, %s63
      %p65 = scmp.eq.s32.totalorder %s25, 0
      %p66 = por %p64, %p65
      %s68 = sadd.s32 %s67, 1
      %p71 = scmp.eq.s32.totalorder %s19, 1
      %p72 = scmp.ne.s32.totalorder %s67, %s69
      %p73 = scmp.eq.s32.totalorder %s19, 0
      %p74 = por %p72, %p73
      %p75 = scmp.ne.s32.totalorder %s67, %s69
      %p76 = scmp.eq.s32.totalorder %s24, 1
      %p77 = por %p75, %p76
      %p78 = scmp.ne.s32.totalorder %s69, %s70
      %p79 = scmp.eq.s32.totalorder %s24, 0
      %p80 = por %p78, %p79
      %p81 = scmp.ne.s32.totalorder %s69, %s70
      %p82 = scmp.eq.s32.totalorder %s25, 1
      %p83 = por %p81, %p82
      %p85 = scmp.ne.s32.totalorder %s70, %s84
      %p86 = scmp.eq.s32.totalorder %s25, 0
      %p87 = por %p85, %p86
      %s89 = sadd.s32 %s88, 1
      %p92 = scmp.eq.s32.totalorder %s19, 1
      %p93 = scmp.ne.s32.totalorder %s88, %s90
      %p94 = scmp.eq.s32.totalorder %s19, 0
      %p95 = por %p93, %p94
      %p96 = scmp.ne.s32.totalorder %s88, %s90
      %p97 = scmp.eq.s32.totalorder %s24, 1
      %p98 = por %p96, %p97
      %p99 = scmp.ne.s32.totalorder %s90, %s91
      %p100 = scmp.eq.s32.totalorder %s24, 0
      %p101 = por %p99, %p100
      %p102 = scmp.ne.s32.totalorder %s90, %s91
      %p103 = scmp.eq.s32.totalorder %s25, 1
      %p104 = por %p102, %p103
      %p106 = scmp.ne.s32.totalorder %s91, %s105
      %p107 = scmp.eq.s32.totalorder %s25, 0
      %p108 = por %p106, %p107
      %s110 = sadd.s32 %s109, 1
      %p113 = scmp.eq.s32.totalorder %s19, 1
      %p114 = scmp.ne.s32.totalorder %s109, %s111
      %p115 = scmp.eq.s32.totalorder %s19, 0
      %p116 = por %p114, %p115
      %p117 = scmp.ne.s32.totalorder %s109, %s111
      %p118 = scmp.eq.s32.totalorder %s24, 1
      %p119 = por %p117, %p118
      %p120 = scmp.ne.s32.totalorder %s111, %s112
      %p121 = scmp.eq.s32.totalorder %s24, 0
      %p122 = por %p120, %p121
      %p123 = scmp.ne.s32.totalorder %s111, %s112
      %p124 = scmp.eq.s32.totalorder %s25, 1
      %p125 = por %p123, %p124
      %p127 = scmp.ne.s32.totalorder %s112, %s126
      %p128 = scmp.eq.s32.totalorder %s25, 0
      %p129 = por %p127, %p128
      %s130 = ssub.s32 %s26, %s38
      %s131 = ssub.s32 %s27, %s34
      %s132 = sor.u32 %s130, %s131
      %p133 = scmp.eq.s32.totalorder %s132, 0
      %s135 = sadd.s32 %s134, 1
      %s136 = scalar_select %p133, %s134, %s135
      %p139 = pneg %p133
      %p140 = scmp.eq.s32.totalorder %s19, 1
      %p141 = por %p139, %p140
      %p142 = scmp.ne.s32.totalorder %s134, %s137
      %p143 = scmp.eq.s32.totalorder %s19, 0
      %p144 = por %p142, %p143
      %p145 = scmp.ne.s32.totalorder %s134, %s137
      %p146 = scmp.eq.s32.totalorder %s24, 1
      %p147 = por %p145, %p146
      %p148 = scmp.ne.s32.totalorder %s137, %s138
      %p149 = scmp.eq.s32.totalorder %s24, 0
      %p150 = por %p148, %p149
      %p151 = scmp.ne.s32.totalorder %s137, %s138
      %p152 = scmp.eq.s32.totalorder %s25, 1
      %p153 = por %p151, %p152
      %p155 = scmp.ne.s32.totalorder %s138, %s154
      %p156 = scmp.eq.s32.totalorder %s25, 0
      %p157 = por %p155, %p156
      %s158 = ssub.s32 %s26, %s38
      %s159 = ssub.s32 %s27, %s34
      %s160 = sor.u32 %s158, %s159
      %p161 = scmp.eq.s32.totalorder %s160, 0
      %s163 = sadd.s32 %s162, 1
      %s164 = scalar_select %p161, %s162, %s163
      %p167 = pneg %p161
      %p168 = scmp.eq.s32.totalorder %s19, 1
      %p169 = por %p167, %p168
      %p170 = scmp.ne.s32.totalorder %s162, %s165
      %p171 = scmp.eq.s32.totalorder %s19, 0
      %p172 = por %p170, %p171
      %p173 = scmp.ne.s32.totalorder %s162, %s165
      %p174 = scmp.eq.s32.totalorder %s24, 1
      %p175 = por %p173, %p174
      %p176 = scmp.ne.s32.totalorder %s165, %s166
      %p177 = scmp.eq.s32.totalorder %s24, 0
      %p178 = por %p176, %p177
      %p179 = scmp.ne.s32.totalorder %s165, %s166
      %p180 = scmp.eq.s32.totalorder %s25, 1
      %p181 = por %p179, %p180
      %p183 = scmp.ne.s32.totalorder %s166, %s182
      %p184 = scmp.eq.s32.totalorder %s25, 0
      %p185 = por %p183, %p184
      %s186 = ssub.s32 %s26, %s38
      %s187 = ssub.s32 %s27, %s34
      %s188 = sor.u32 %s186, %s187
      %p189 = scmp.eq.s32.totalorder %s188, 0
      %s191 = sadd.s32 %s190, 1
      %s192 = scalar_select %p189, %s190, %s191
      %p195 = pneg %p189
      %p196 = scmp.eq.s32.totalorder %s19, 1
      %p197 = por %p195, %p196
      %p198 = scmp.ne.s32.totalorder %s190, %s193
      %p199 = scmp.eq.s32.totalorder %s19, 0
      %p200 = por %p198, %p199
      %p201 = scmp.ne.s32.totalorder %s190, %s193
      %p202 = scmp.eq.s32.totalorder %s24, 1
      %p203 = por %p201, %p202
      %p204 = scmp.ne.s32.totalorder %s193, %s194
      %p205 = scmp.eq.s32.totalorder %s24, 0
      %p206 = por %p204, %p205
      %p207 = scmp.ne.s32.totalorder %s193, %s194
      %p208 = scmp.eq.s32.totalorder %s25, 1
      %p209 = por %p207, %p208
      %p211 = scmp.ne.s32.totalorder %s194, %s210
      %p212 = scmp.eq.s32.totalorder %s25, 0
      %p213 = por %p211, %p212
      %p214 = scmp.le.s32.totalorder 1, %s19
      %p215 = scmp.lt.s32.totalorder %s19, 3
      %p216 = pnand %p214, %p215
      %p217 = pneg %p216
      // Predicated region
      $region9: #{tpu_custom_call.1} parent=5 // pred_check
        _
      $region10: #{tpu_custom_call.1} parent=5 // pred_check_branch
        %219 = sbr.rel (%p216) target = $region12
      $region11: #{tpu_custom_call.1} parent=5 // pred_region
        %s220 = ssub.s32 %s19, 1
        // Predicated region
        $region13: #{tpu_custom_call.1} parent=11 // pred_check
          %p221 = pneg %p80
        $region14: #{tpu_custom_call.1} parent=11 // pred_check_branch
          %223 = sbr.rel (%p221) target = $region16
        $region15: #{tpu_custom_call.1} parent=11 // pred_region
          _
        $region16: #{tpu_custom_call.1} parent=11 // pred_fallthru
          _
        // Predicated region
        $region17: #{tpu_custom_call.1} parent=11 // pred_check
          %p224 = pneg %p101
        $region18: #{tpu_custom_call.1} parent=11 // pred_check_branch
          %226 = sbr.rel (%p224) target = $region20
        $region19: #{tpu_custom_call.1} parent=11 // pred_region
          _
        $region20: #{tpu_custom_call.1} parent=11 // pred_fallthru
          _
        // Predicated region
        $region21: #{tpu_custom_call.1} parent=11 // pred_check
          %p227 = pneg %p122
        $region22: #{tpu_custom_call.1} parent=11 // pred_check_branch
          %229 = sbr.rel (%p227) target = $region24
        $region23: #{tpu_custom_call.1} parent=11 // pred_region
          _
        $region24: #{tpu_custom_call.1} parent=11 // pred_fallthru
          _
      $region12: #{tpu_custom_call.1} parent=5 // pred_fallthru
        _
      %p230 = scmp.lt.s32.totalorder %s19, 2
      // Predicated region
      $region25: #{tpu_custom_call.1} parent=5 // pred_check
        %p231 = pneg %p230
      $region26: #{tpu_custom_call.1} parent=5 // pred_check_branch
        %233 = sbr.rel (%p231) target = $region28
      $region27: #{tpu_custom_call.1} parent=5 // pred_region
        // Predicated region
        $region29: #{tpu_custom_call.1} parent=27 // pred_check
          %p234 = pneg %p53
        $region30: #{tpu_custom_call.1} parent=27 // pred_check_branch
          %236 = sbr.rel (%p234) target = $region32
        $region31: #{tpu_custom_call.1} parent=27 // pred_region
          %p237 = scmp.lt.s32.totalorder %s26, 1
          %s238 = scalar_select %p237, %s26, 1
          %p239 = scmp.lt.s32.totalorder %s27, 0
          %s240 = scalar_select %p239, %s27, 0
          %s241 = sadd.s32 %s240, %s238
          %s242 = smul.addr %s241, 4
          %s243 = scalar_lea.vmem %s0, %s242
        $region32: #{tpu_custom_call.1} parent=27 // pred_fallthru
          _
      $region28: #{tpu_custom_call.1} parent=5 // pred_fallthru
        _
      %p244 = scmp.le.s32.totalorder 1, %s19
      %p245 = scmp.lt.s32.totalorder %s19, 3
      %p246 = pnand %p244, %p245
      %p247 = pneg %p246
      // Predicated region
      $region33: #{tpu_custom_call.1} parent=5 // pred_check
        _
      $region34: #{tpu_custom_call.1} parent=5 // pred_check_branch
        %249 = sbr.rel (%p246) target = $region36
      $region35: #{tpu_custom_call.1} parent=5 // pred_region
        %s250 = ssub.s32 %s19, 1
        %p251 = scmp.lt.s32.totalorder %s28, 1
        %s252 = scalar_select %p251, %s28, 1
        %p253 = scmp.lt.s32.totalorder %s29, 0
        %s254 = scalar_select %p253, %s29, 0
        %s255 = sadd.s32 %s254, %s252
        %s256 = smul.addr %s255, 4
        %s257 = scalar_lea.vmem %s0, %s256
        %p258 = pneg %p59
        %p259 = pneg %p56
        %p260 = pneg %p80
        %p261 = pneg %p77
        %p262 = pneg %p101
        %p263 = pneg %p98
        %p264 = pneg %p122
        %p265 = pneg %p119
        %p266 = pneg %p150
        %p267 = pneg %p147
        %s268 = sand.u32 %s137, 1
        %s269 = scalar_lea.sflag [#allocation3], %s268
        %s270 = sand.u32 %s137, 1
        %s271 = smul.addr %s270, 4
        %s272 = scalar_lea.vmem [#allocation2], %s271
        %p273 = pneg %p178
        %p274 = pneg %p175
        %s275 = sand.u32 %s24, 1
        %s276 = scalar_lea.sflag [#allocation5], %s275
        %s277 = sand.u32 %s165, 1
        %s278 = smul.addr %s277, 4
        %s279 = scalar_lea.vmem [#allocation4], %s278
        %p280 = pneg %p206
        %p281 = pneg %p203
        %s282 = sand.u32 %s24, 1
        %s283 = scalar_lea.sflag [#allocation5], %s282
        %s284 = sand.u32 %s193, 1
        %s285 = smul.addr %s284, 4
        %s286 = scalar_lea.vmem [#allocation6], %s285
        %p287 = scmp.lt.s32.totalorder %s28, 1
        %s288 = scalar_select %p287, %s28, 1
        %p289 = scmp.lt.s32.totalorder %s29, 0
        %s290 = scalar_select %p289, %s29, 0
        %s291 = sadd.s32 %s290, %s288
        %s292 = smul.addr %s291, 4
        %s293 = scalar_lea.vmem %s0, %s292
        %v295 = vld [vmem:[%s293] sm:$0xf]
        %v296 = vld [vmem:[%s1] sm:$0xf]
        %v297 = vld [vmem:[%s1 + $0x4] sm:$0xf]
        %v298 = vld [vmem:[%s1 + $0x8] sm:$0xf]
        %v299 = vld [vmem:[%s1 + $0xc] sm:$0xf]
        %v300 = vld [vmem:[%s1 + $0x10] sm:$0xf]
        %v301 = vld [vmem:[%s1 + $0x14] sm:$0xf]
        %v302 = vld [vmem:[%s1 + $0x18] sm:$0xf]
        %v303 = vld [vmem:[%s1 + $0x1c] sm:$0xf]
        %v304 = vld [vmem:[%s1 + $0x20] sm:$0xf]
        %v305 = vld [vmem:[%s1 + $0x24] sm:$0xf]
        %v306 = vld [vmem:[%s1 + $0x28] sm:$0xf]
        %v307 = vld [vmem:[%s1 + $0x2c] sm:$0xf]
        %v308 = vld [vmem:[%s1 + $0x30] sm:$0xf]
        %v309 = vld [vmem:[%s1 + $0x34] sm:$0xf]
        %v310 = vld [vmem:[%s1 + $0x38] sm:$0xf]
        %v311 = vld [vmem:[%s1 + $0x3c] sm:$0xf]
        %v328 = vunpack.c.l.b16 %v296
        %v329 = vunpack.c.l.b16 %v297
        %v330 = vunpack.c.l.b16 %v298
        %v331 = vunpack.c.l.b16 %v299
        %v332 = vunpack.c.l.b16 %v300
        %v333 = vunpack.c.l.b16 %v301
        %v334 = vunpack.c.l.b16 %v302
        %v335 = vunpack.c.l.b16 %v303
        %v336 = vunpack.c.l.b16 %v304
        %v337 = vunpack.c.l.b16 %v305
        %v338 = vunpack.c.l.b16 %v306
        %v339 = vunpack.c.l.b16 %v307
        %v340 = vunpack.c.l.b16 %v308
        %v341 = vunpack.c.l.b16 %v309
        %v342 = vunpack.c.l.b16 %v310
        %v343 = vunpack.c.l.b16 %v311
        %v344 = vpack.c.b16 %v329, %v328
        %v345 = vpack.c.b16 %v331, %v330
        %v346 = vpack.c.b16 %v333, %v332
        %v347 = vpack.c.b16 %v335, %v334
        %v348 = vpack.c.b16 %v337, %v336
        %v349 = vpack.c.b16 %v339, %v338
        %v350 = vpack.c.b16 %v341, %v340
        %v351 = vpack.c.b16 %v343, %v342
        %360 = vmatprep.subr.bf16.mxu0 0
        %361 = vmatpush1.bf16.msra.mxu0 %v344
        %362 = vmatprep.subr.bf16.mxu0 0
        %363 = vmatpush1.bf16.msra.mxu0 %v345
        %364 = vmatprep.subr.bf16.mxu0 0
        %365 = vmatpush1.bf16.msra.mxu0 %v346
        %366 = vmatprep.subr.bf16.mxu0 0
        %367 = vmatpush1.bf16.msra.mxu0 %v347
        %368 = vmatprep.subr.bf16.mxu0 0
        %369 = vmatpush1.bf16.msra.mxu0 %v348
        %370 = vmatprep.subr.bf16.mxu0 0
        %371 = vmatpush1.bf16.msra.mxu0 %v349
        %372 = vmatprep.subr.bf16.mxu0 0
        %373 = vmatpush1.bf16.msra.mxu0 %v350
        %374 = vmatprep.subr.bf16.mxu0 0
        %375 = vmatpush1.bf16.msra.mxu0 %v351
        %376 = vmatprep.subr.bf16.mxu0 0
        %377 = vmatpush1.bf16.msra.mxu0 0
        %378 = vmatprep.subr.bf16.mxu0 0
        %379 = vmatpush1.bf16.msra.mxu0 0
        %380 = vmatprep.subr.bf16.mxu0 0
        %381 = vmatpush1.bf16.msra.mxu0 0
        %382 = vmatprep.subr.bf16.mxu0 0
        %383 = vmatpush1.bf16.msra.mxu0 0
        %384 = vmatprep.subr.bf16.mxu0 0
        %385 = vmatpush1.bf16.msra.mxu0 0
        %386 = vmatprep.subr.bf16.mxu0 0
        %387 = vmatpush1.bf16.msra.mxu0 0
        %388 = vmatprep.subr.bf16.mxu0 0
        %389 = vmatpush1.bf16.msra.mxu0 0
        %390 = vmatprep.subr.bf16.mxu0 0
        %391 = vmatpush1.bf16.msra.mxu0 0
        %392 = vmatprep.mubr.bf16.mxu0 0
        %393 = vmatmul.mubr.bf16.gmra.mrb[0].mxu0 %v295
        %v394 = vpop.f32.mrb[0].mxu0
        %v395 = vadd.f32 0.0, %v394
        %v396 = vpop.f32.mrb[0].mxu0
        %v397 = vpop.f32.mrb[0].mxu0
        %v398 = vpop.f32.mrb[0].mxu0
        %399 = vdwg.mxu0
        %v400 = vpack.c.bf16 %v395, %v395
        %vm401 = vcmask 60416
        %402 = vst.msk [vmem:[%s272] sm:$0xf] %vm401, %v400
        %v403 = vld [vmem:[%s2] sm:$0xf]
        %v404 = vld [vmem:[%s2 + $0x4] sm:$0xf]
        %v405 = vld [vmem:[%s2 + $0x8] sm:$0xf]
        %v406 = vld [vmem:[%s2 + $0xc] sm:$0xf]
        %v407 = vld [vmem:[%s2 + $0x10] sm:$0xf]
        %v408 = vld [vmem:[%s2 + $0x14] sm:$0xf]
        %v409 = vld [vmem:[%s2 + $0x18] sm:$0xf]
        %v410 = vld [vmem:[%s2 + $0x1c] sm:$0xf]
        %v411 = vld [vmem:[%s2 + $0x20] sm:$0xf]
        %v412 = vld [vmem:[%s2 + $0x24] sm:$0xf]
        %v413 = vld [vmem:[%s2 + $0x28] sm:$0xf]
        %v414 = vld [vmem:[%s2 + $0x2c] sm:$0xf]
        %v415 = vld [vmem:[%s2 + $0x30] sm:$0xf]
        %v416 = vld [vmem:[%s2 + $0x34] sm:$0xf]
        %v417 = vld [vmem:[%s2 + $0x38] sm:$0xf]
        %v418 = vld [vmem:[%s2 + $0x3c] sm:$0xf]
        %v435 = vunpack.c.l.b16 %v403
        %v436 = vunpack.c.l.b16 %v404
        %v437 = vunpack.c.l.b16 %v405
        %v438 = vunpack.c.l.b16 %v406
        %v439 = vunpack.c.l.b16 %v407
        %v440 = vunpack.c.l.b16 %v408
        %v441 = vunpack.c.l.b16 %v409
        %v442 = vunpack.c.l.b16 %v410
        %v443 = vunpack.c.l.b16 %v411
        %v444 = vunpack.c.l.b16 %v412
        %v445 = vunpack.c.l.b16 %v413
        %v446 = vunpack.c.l.b16 %v414
        %v447 = vunpack.c.l.b16 %v415
        %v448 = vunpack.c.l.b16 %v416
        %v449 = vunpack.c.l.b16 %v417
        %v450 = vunpack.c.l.b16 %v418
        %v451 = vpack.c.b16 %v436, %v435
        %v452 = vpack.c.b16 %v438, %v437
        %v453 = vpack.c.b16 %v440, %v439
        %v454 = vpack.c.b16 %v442, %v441
        %v455 = vpack.c.b16 %v444, %v443
        %v456 = vpack.c.b16 %v446, %v445
        %v457 = vpack.c.b16 %v448, %v447
        %v458 = vpack.c.b16 %v450, %v449
        %467 = vmatprep.subr.bf16.mxu0 0
        %468 = vmatpush1.bf16.msra.mxu0 %v451
        %469 = vmatprep.subr.bf16.mxu0 0
        %470 = vmatpush1.bf16.msra.mxu0 %v452
        %471 = vmatprep.subr.bf16.mxu0 0
        %472 = vmatpush1.bf16.msra.mxu0 %v453
        %473 = vmatprep.subr.bf16.mxu0 0
        %474 = vmatpush1.bf16.msra.mxu0 %v454
        %475 = vmatprep.subr.bf16.mxu0 0
        %476 = vmatpush1.bf16.msra.mxu0 %v455
        %477 = vmatprep.subr.bf16.mxu0 0
        %478 = vmatpush1.bf16.msra.mxu0 %v456
        %479 = vmatprep.subr.bf16.mxu0 0
        %480 = vmatpush1.bf16.msra.mxu0 %v457
        %481 = vmatprep.subr.bf16.mxu0 0
        %482 = vmatpush1.bf16.msra.mxu0 %v458
        %483 = vmatprep.subr.bf16.mxu0 0
        %484 = vmatpush1.bf16.msra.mxu0 0
        %485 = vmatprep.subr.bf16.mxu0 0
        %486 = vmatpush1.bf16.msra.mxu0 0
        %487 = vmatprep.subr.bf16.mxu0 0
        %488 = vmatpush1.bf16.msra.mxu0 0
        %489 = vmatprep.subr.bf16.mxu0 0
        %490 = vmatpush1.bf16.msra.mxu0 0
        %491 = vmatprep.subr.bf16.mxu0 0
        %492 = vmatpush1.bf16.msra.mxu0 0
        %493 = vmatprep.subr.bf16.mxu0 0
        %494 = vmatpush1.bf16.msra.mxu0 0
        %495 = vmatprep.subr.bf16.mxu0 0
        %496 = vmatpush1.bf16.msra.mxu0 0
        %497 = vmatprep.subr.bf16.mxu0 0
        %498 = vmatpush1.bf16.msra.mxu0 0
        %499 = vmatprep.mubr.bf16.mxu0 0
        %500 = vmatmul.mubr.bf16.gmra.mrb[0].mxu0 %v295
        %v501 = vpop.f32.mrb[0].mxu0
        %v502 = vadd.f32 0.0, %v501
        %v503 = vpop.f32.mrb[0].mxu0
        %v504 = vpop.f32.mrb[0].mxu0
        %v505 = vpop.f32.mrb[0].mxu0
        %506 = vdwg.mxu0
        %v507 = vpack.c.bf16 %v502, %v502
        %508 = vst.msk [vmem:[%s279] sm:$0xf] %vm401, %v507
        %v509 = vld [vmem:[%s3] sm:$0xf]
        %v510 = vld [vmem:[%s3 + $0x4] sm:$0xf]
        %v511 = vld [vmem:[%s3 + $0x8] sm:$0xf]
        %v512 = vld [vmem:[%s3 + $0xc] sm:$0xf]
        %v513 = vld [vmem:[%s3 + $0x10] sm:$0xf]
        %v514 = vld [vmem:[%s3 + $0x14] sm:$0xf]
        %v515 = vld [vmem:[%s3 + $0x18] sm:$0xf]
        %v516 = vld [vmem:[%s3 + $0x1c] sm:$0xf]
        %v517 = vld [vmem:[%s3 + $0x20] sm:$0xf]
        %v518 = vld [vmem:[%s3 + $0x24] sm:$0xf]
        %v519 = vld [vmem:[%s3 + $0x28] sm:$0xf]
        %v520 = vld [vmem:[%s3 + $0x2c] sm:$0xf]
        %v521 = vld [vmem:[%s3 + $0x30] sm:$0xf]
        %v522 = vld [vmem:[%s3 + $0x34] sm:$0xf]
        %v523 = vld [vmem:[%s3 + $0x38] sm:$0xf]
        %v524 = vld [vmem:[%s3 + $0x3c] sm:$0xf]
        %v541 = vunpack.c.l.b16 %v509
        %v542 = vunpack.c.l.b16 %v510
        %v543 = vunpack.c.l.b16 %v511
        %v544 = vunpack.c.l.b16 %v512
        %v545 = vunpack.c.l.b16 %v513
        %v546 = vunpack.c.l.b16 %v514
        %v547 = vunpack.c.l.b16 %v515
        %v548 = vunpack.c.l.b16 %v516
        %v549 = vunpack.c.l.b16 %v517
        %v550 = vunpack.c.l.b16 %v518
        %v551 = vunpack.c.l.b16 %v519
        %v552 = vunpack.c.l.b16 %v520
        %v553 = vunpack.c.l.b16 %v521
        %v554 = vunpack.c.l.b16 %v522
        %v555 = vunpack.c.l.b16 %v523
        %v556 = vunpack.c.l.b16 %v524
        %v557 = vpack.c.b16 %v542, %v541
        %v558 = vpack.c.b16 %v544, %v543
        %v559 = vpack.c.b16 %v546, %v545
        %v560 = vpack.c.b16 %v548, %v547
        %v561 = vpack.c.b16 %v550, %v549
        %v562 = vpack.c.b16 %v552, %v551
        %v563 = vpack.c.b16 %v554, %v553
        %v564 = vpack.c.b16 %v556, %v555
        %573 = vmatprep.subr.bf16.mxu0 0
        %574 = vmatpush1.bf16.msra.mxu0 %v557
        %575 = vmatprep.subr.bf16.mxu0 0
        %576 = vmatpush1.bf16.msra.mxu0 %v558
        %577 = vmatprep.subr.bf16.mxu0 0
        %578 = vmatpush1.bf16.msra.mxu0 %v559
        %579 = vmatprep.subr.bf16.mxu0 0
        %580 = vmatpush1.bf16.msra.mxu0 %v560
        %581 = vmatprep.subr.bf16.mxu0 0
        %582 = vmatpush1.bf16.msra.mxu0 %v561
        %583 = vmatprep.subr.bf16.mxu0 0
        %584 = vmatpush1.bf16.msra.mxu0 %v562
        %585 = vmatprep.subr.bf16.mxu0 0
        %586 = vmatpush1.bf16.msra.mxu0 %v563
        %587 = vmatprep.subr.bf16.mxu0 0
        %588 = vmatpush1.bf16.msra.mxu0 %v564
        %589 = vmatprep.subr.bf16.mxu0 0
        %590 = vmatpush1.bf16.msra.mxu0 0
        %591 = vmatprep.subr.bf16.mxu0 0
        %592 = vmatpush1.bf16.msra.mxu0 0
        %593 = vmatprep.subr.bf16.mxu0 0
        %594 = vmatpush1.bf16.msra.mxu0 0
        %595 = vmatprep.subr.bf16.mxu0 0
        %596 = vmatpush1.bf16.msra.mxu0 0
        %597 = vmatprep.subr.bf16.mxu0 0
        %598 = vmatpush1.bf16.msra.mxu0 0
        %599 = vmatprep.subr.bf16.mxu0 0
        %600 = vmatpush1.bf16.msra.mxu0 0
        %601 = vmatprep.subr.bf16.mxu0 0
        %602 = vmatpush1.bf16.msra.mxu0 0
        %603 = vmatprep.subr.bf16.mxu0 0
        %604 = vmatpush1.bf16.msra.mxu0 0
        %605 = vmatprep.mubr.bf16.mxu0 0
        %606 = vmatmul.mubr.bf16.gmra.mrb[0].mxu0 %v295
        %v607 = vpop.f32.mrb[0].mxu0
        %v608 = vadd.f32 0.0, %v607
        %v609 = vpop.f32.mrb[0].mxu0
        %v610 = vpop.f32.mrb[0].mxu0
        %v611 = vpop.f32.mrb[0].mxu0
        %612 = vdwg.mxu0
        %v613 = vpack.c.bf16 %v608, %v608
        %614 = vst.msk [vmem:[%s286] sm:$0xf] %vm401, %v613
        %s615 = sand.u32 %s137, 1
        %s616 = scalar_lea.sflag [#allocation3], %s615
        %s617 = sand.u32 %s137, 1
        %s618 = smul.addr %s617, 4
        %s619 = scalar_lea.vmem [#allocation2], %s618
        %s620 = sand.u32 %s24, 1
        %s621 = scalar_lea.sflag [#allocation5], %s620
        %s622 = sand.u32 %s165, 1
        %s623 = smul.addr %s622, 4
        %s624 = scalar_lea.vmem [#allocation4], %s623
        %s625 = sand.u32 %s24, 1
        %s626 = scalar_lea.sflag [#allocation5], %s625
        %s627 = sand.u32 %s193, 1
        %s628 = smul.addr %s627, 4
        %s629 = scalar_lea.vmem [#allocation6], %s628
        // Predicated region
        $region37: #{tpu_custom_call.1} parent=35 // pred_check
          %p630 = pneg %p147
        $region38: #{tpu_custom_call.1} parent=35 // pred_check_branch
          %632 = sbr.rel (%p630) target = $region40
        $region39: #{tpu_custom_call.1} parent=35 // pred_region
          %s634 = ssub.s32 64, 64
          %635 = vsyncadd %s616, %s634
          %s636 = sadd.s32 %s29, %s28
          %s637 = smul.addr %s636, 64
          %s638 = scalar_lea.hbm %s4, %s637
          %s640 = sshll.u32 %s619, 4
          %s641 = int_to_ptr.vmem [resolvable:$true] %s640
          %643 = dma.vmem_to_hbm [thread:$0]  %s641, 64, %s638, %s616
        $region40: #{tpu_custom_call.1} parent=35 // pred_fallthru
          _
        // Predicated region
        $region41: #{tpu_custom_call.1} parent=35 // pred_check
          %p644 = pneg %p175
        $region42: #{tpu_custom_call.1} parent=35 // pred_check_branch
          %646 = sbr.rel (%p644) target = $region44
        $region43: #{tpu_custom_call.1} parent=35 // pred_region
          %s648 = ssub.s32 64, 64
          %649 = vsyncadd %s621, %s648
          %s650 = sadd.s32 %s29, %s28
          %s651 = smul.addr %s650, 64
          %s652 = scalar_lea.hbm %s5, %s651
          %s654 = sshll.u32 %s624, 4
          %s655 = int_to_ptr.vmem [resolvable:$true] %s654
          %657 = dma.vmem_to_hbm [thread:$0]  %s655, 64, %s652, %s621
        $region44: #{tpu_custom_call.1} parent=35 // pred_fallthru
          _
        // Predicated region
        $region45: #{tpu_custom_call.1} parent=35 // pred_check
          %p658 = pneg %p203
        $region46: #{tpu_custom_call.1} parent=35 // pred_check_branch
          %660 = sbr.rel (%p658) target = $region48
        $region47: #{tpu_custom_call.1} parent=35 // pred_region
          %s662 = ssub.s32 64, 64
          %663 = vsyncadd %s626, %s662
          %s664 = sadd.s32 %s29, %s28
          %s665 = smul.addr %s664, 64
          %s666 = scalar_lea.hbm %s6, %s665
          %s668 = sshll.u32 %s629, 4
          %s669 = int_to_ptr.vmem [resolvable:$true] %s668
          %671 = dma.vmem_to_hbm [thread:$0]  %s669, 64, %s666, %s626
        $region48: #{tpu_custom_call.1} parent=35 // pred_fallthru
          _
      $region36: #{tpu_custom_call.1} parent=5 // pred_fallthru
        _
      %p672 = scmp.le.s32.totalorder 2, %s19
      // Predicated region
      $region49: #{tpu_custom_call.1} parent=5 // pred_check
        %p673 = pneg %p672
      $region50: #{tpu_custom_call.1} parent=5 // pred_check_branch
        %675 = sbr.rel (%p673) target = $region52
      $region51: #{tpu_custom_call.1} parent=5 // pred_region
        %s676 = ssub.s32 %s19, 2
        // Predicated region
        $region53: #{tpu_custom_call.1} parent=51 // pred_check
          %p677 = pneg %p153
        $region54: #{tpu_custom_call.1} parent=51 // pred_check_branch
          %679 = sbr.rel (%p677) target = $region56
        $region55: #{tpu_custom_call.1} parent=51 // pred_region
          %s680 = sand.u32 %s138, 1
          %s681 = scalar_lea.sflag [#allocation3], %s680
          %s682 = sand.u32 %s138, 1
          %s683 = smul.addr %s682, 4
          %s684 = scalar_lea.vmem [#allocation2], %s683
          %685 = dma.done %s681, 64
        $region56: #{tpu_custom_call.1} parent=51 // pred_fallthru
          _
        // Predicated region
        $region57: #{tpu_custom_call.1} parent=51 // pred_check
          %p686 = pneg %p181
        $region58: #{tpu_custom_call.1} parent=51 // pred_check_branch
          %688 = sbr.rel (%p686) target = $region60
        $region59: #{tpu_custom_call.1} parent=51 // pred_region
          %s689 = sand.u32 %s25, 1
          %s690 = scalar_lea.sflag [#allocation5], %s689
          %s691 = sand.u32 %s166, 1
          %s692 = smul.addr %s691, 4
          %s693 = scalar_lea.vmem [#allocation4], %s692
          %694 = dma.done %s690, 64
        $region60: #{tpu_custom_call.1} parent=51 // pred_fallthru
          _
        // Predicated region
        $region61: #{tpu_custom_call.1} parent=51 // pred_check
          %p695 = pneg %p209
        $region62: #{tpu_custom_call.1} parent=51 // pred_check_branch
          %697 = sbr.rel (%p695) target = $region64
        $region63: #{tpu_custom_call.1} parent=51 // pred_region
          %s698 = sand.u32 %s25, 1
          %s699 = scalar_lea.sflag [#allocation5], %s698
          %s700 = sand.u32 %s194, 1
          %s701 = smul.addr %s700, 4
          %s702 = scalar_lea.vmem [#allocation6], %s701
          %703 = dma.done %s699, 64
        $region64: #{tpu_custom_call.1} parent=51 // pred_fallthru
          _
      $region52: #{tpu_custom_call.1} parent=5 // pred_fallthru
        _
    $region6: #{tpu_custom_call.1} parent=1 // loop_footer
      %s23 = sadd.s32 1, %s19
    $region7: #{tpu_custom_call.1} parent=1 // loop_footer_branch
      %18 = sbr.rel target = $region3
    $region8: #{tpu_custom_call.1} parent=1 // loop_exit
      _
    %704 = vsyncpa [#allocation3], 1
    %s705 = scalar_lea.sflag [#allocation3], 1
    %706 = vsyncpa %s705, 1
    %707 = vsyncpa [#allocation5], 1
    %s708 = scalar_lea.sflag [#allocation5], 1
    %709 = vsyncpa %s708, 1

</llo_original>
